<compile_context>
chip_gen: v7x
topology: tpu7x:2x2x1
jax: 0.10.0
libtpu: 0.0.40
codegen_flags: <defaults>
</compile_context>

<pallas_src>
import jax
import jax.numpy as jnp
from jax.experimental import pallas as pl
from jax.experimental.pallas import tpu as pltpu

EPSILON = 0.1
GAMMA = 0.15


def _round_up(n, m):
    return ((n + m - 1) // m) * m


def _tlrnn_step_kernel(x_ref, h_ref, h2_ref,
                       ith_wT_ref, ith_b_ref,
                       hth_skewT_ref, h2th2_skewT_ref, h2_b_ref,
                       fb_w_ref,
                       hto_wT_ref, o_b_ref,
                       out_ref, h_new_ref, h2_new_ref):
    f32 = jnp.float32
    bf16 = jnp.bfloat16

    x = x_ref[...]            # (TB, Ip)  f32
    h_old = h_ref[...]        # (TB, Hp)  f32
    h2_old = h2_ref[...]      # (TB, Hp)  f32

    # --- stage 1: hidden = h_old + eps * tanh(x@ith^T + h_old@(W^T-W) - g*h_old + b)
    pre1 = (jnp.dot(x.astype(bf16), ith_wT_ref[...], preferred_element_type=f32)
            + jnp.dot(h_old.astype(bf16), hth_skewT_ref[...], preferred_element_type=f32)
            - GAMMA * h_old
            + ith_b_ref[...])
    hidden = h_old + EPSILON * jnp.tanh(pre1)

    # --- stage 2: hidden2 = h2_old + eps * tanh(hidden@fb_w - g*hidden
    #                                            + h2_old@(W2^T-W2) - g*h2_old + b2)
    pre2 = (jnp.dot(hidden.astype(bf16), fb_w_ref[...], preferred_element_type=f32)
            + jnp.dot(h2_old.astype(bf16), h2th2_skewT_ref[...], preferred_element_type=f32)
            - GAMMA * (hidden + h2_old)
            + h2_b_ref[...])
    hidden2 = h2_old + EPSILON * jnp.tanh(pre2)

    # --- output
    out = (jnp.dot(hidden2.astype(bf16), hto_wT_ref[...], preferred_element_type=f32)
           + o_b_ref[...])

    out_ref[...] = out
    h_new_ref[...] = hidden
    h2_new_ref[...] = hidden2


def tlrnn_as_sc_forward(x, hidden_old, hidden2_old, params, *, block_b=128):
    """One TLRNN_AS_SC step. Returns (output, hidden_new, hidden2_new)."""
    x = jnp.asarray(x, jnp.float32)
    hidden_old = jnp.asarray(hidden_old, jnp.float32)
    hidden2_old = jnp.asarray(hidden2_old, jnp.float32)

    B, I = x.shape
    H = hidden_old.shape[1]
    O = params["hto_weights"].shape[0]

    # ---- weight-only transforms, hoisted out of the kernel (done once per call /
    #      per weight update when jitted into a larger graph). Stored bf16.
    bf16 = jnp.bfloat16
    ith_wT = params["ith_weights"].T.astype(bf16)                               # (I, H)
    hth_skewT = (params["hth_weights"].T - params["hth_weights"]).astype(bf16)  # (H, H)
    h2th2_skewT = (params["h2th2_weights"].T - params["h2th2_weights"]).astype(bf16)
    fb_w = params["fb_weights"].astype(bf16)                                    # (H, H), used un-transposed
    hto_wT = params["hto_weights"].T.astype(bf16)                               # (H, O)

    ith_b = params["ith_bias"].reshape(1, H).astype(jnp.float32)
    h2_b = params["h2_bias"].reshape(1, H).astype(jnp.float32)
    o_b = params["o_bias"].reshape(1, O).astype(jnp.float32)

    # ---- lane-dense padding: last dims -> x128, batch -> x8 (zero padding is
    #      semantics-preserving: padded rows/cols of weights, biases and state
    #      are zero, so they never leak into the real lanes).
    TB = min(block_b, _round_up(B, 8))
    Bp = _round_up(B, TB)
    Ip = _round_up(I, 128)
    Hp = _round_up(H, 128)
    Op = _round_up(O, 128)

    def pad2(a, r, c):
        return jnp.pad(a, ((0, r - a.shape[0]), (0, c - a.shape[1])))

    x_p = pad2(x, Bp, Ip)
    h_p = pad2(hidden_old, Bp, Hp)
    h2_p = pad2(hidden2_old, Bp, Hp)
    ith_wT_p = pad2(ith_wT, Ip, Hp)
    hth_skewT_p = pad2(hth_skewT, Hp, Hp)
    h2th2_skewT_p = pad2(h2th2_skewT, Hp, Hp)
    fb_w_p = pad2(fb_w, Hp, Hp)
    hto_wT_p = pad2(hto_wT, Hp, Op)
    ith_b_p = pad2(ith_b, 1, Hp)
    h2_b_p = pad2(h2_b, 1, Hp)
    o_b_p = pad2(o_b, 1, Op)

    grid = (Bp // TB,)

    def bspec(shape):   # batch-blocked operand
        return pl.BlockSpec(shape, lambda i: (i, 0))

    def wspec(shape):   # resident weight / bias
        return pl.BlockSpec(shape, lambda i: (0, 0))

    in_specs = [
        bspec((TB, Ip)), bspec((TB, Hp)), bspec((TB, Hp)),
        wspec((Ip, Hp)), wspec((1, Hp)),
        wspec((Hp, Hp)), wspec((Hp, Hp)), wspec((1, Hp)),
        wspec((Hp, Hp)),
        wspec((Hp, Op)), wspec((1, Op)),
    ]
    out_specs = [bspec((TB, Op)), bspec((TB, Hp)), bspec((TB, Hp))]
    out_shape = (
        jax.ShapeDtypeStruct((Bp, Op), jnp.float32),
        jax.ShapeDtypeStruct((Bp, Hp), jnp.float32),
        jax.ShapeDtypeStruct((Bp, Hp), jnp.float32),
    )

    # Raise the scoped VMEM limit only when the padded working set needs it.
    weight_bytes = 2 * (Ip * Hp + 3 * Hp * Hp + Hp * Op)          # bf16, resident
    act_bytes = 4 * TB * (Ip + 4 * Hp + Op) * 2                   # f32 in/out, double-buffered
    vmem_est = 2 * weight_bytes + act_bytes + (4 << 20)
    cp_kwargs = dict(dimension_semantics=("parallel",))
    if vmem_est > (32 << 20):
        cp_kwargs["vmem_limit_bytes"] = int(vmem_est)

    out_p, h_new_p, h2_new_p = pl.pallas_call(
        _tlrnn_step_kernel,
        out_shape=out_shape,
        grid_spec=pltpu.PrefetchScalarGridSpec(
            num_scalar_prefetch=0,
            grid=grid,
            in_specs=in_specs,
            out_specs=out_specs,
        ),
        compiler_params=pltpu.CompilerParams(**cp_kwargs),
    )(x_p, h_p, h2_p,
      ith_wT_p, ith_b_p,
      hth_skewT_p, h2th2_skewT_p, h2_b_p,
      fb_w_p,
      hto_wT_p, o_b_p)

    return out_p[:B, :O], h_new_p[:B, :H], h2_new_p[:B, :H]


def init_params(key, input_size, hidden_size, output_size):
    ks = jax.random.split(key, 6)
    return {
        "ith_weights": jax.random.normal(ks[0], (hidden_size, input_size), jnp.float32),
        "ith_bias": jnp.zeros((hidden_size,), jnp.float32),
        "hth_weights": jax.random.normal(ks[1], (hidden_size, hidden_size), jnp.float32) / hidden_size,
        # hth2_weights exists in the PyTorch module but is unused in forward().
        "hth2_weights": jax.random.normal(ks[2], (hidden_size, hidden_size), jnp.float32) / hidden_size,
        "h2th2_weights": jax.random.normal(ks[3], (hidden_size, hidden_size), jnp.float32) / hidden_size,
        "h2_bias": jnp.zeros((hidden_size,), jnp.float32),
        "fb_weights": jax.random.normal(ks[4], (hidden_size, hidden_size), jnp.float32) / output_size,
        "hto_weights": jax.random.normal(ks[5], (output_size, hidden_size), jnp.float32) / hidden_size,
        "o_bias": jnp.zeros((output_size,), jnp.float32),
    }


def reference_forward(x, h_old, h2_old, params):
    """Pure-JAX f32 replica of the PyTorch forward (source of truth)."""
    H = h_old.shape[1]
    eye = jnp.eye(H, dtype=jnp.float32)
    hth = params["hth_weights"] - params["hth_weights"].T - GAMMA * eye
    fb = params["fb_weights"] - GAMMA * eye
    h2th2 = params["h2th2_weights"] - params["h2th2_weights"].T - GAMMA * eye
    hidden = jnp.tanh(x @ params["ith_weights"].T + h_old @ hth.T + params["ith_bias"])
    hidden = h_old + EPSILON * hidden
    hidden2 = jnp.tanh(hidden @ fb + h2_old @ h2th2.T + params["h2_bias"])
    hidden2 = h2_old + EPSILON * hidden2
    out = hidden2 @ params["hto_weights"].T + params["o_bias"]
    return out, hidden, hidden2


if __name__ == "__main__":
    B, I, H, O = 8, 16, 32, 8
    key = jax.random.PRNGKey(0)
    k_params, k_x, k_h, k_h2 = jax.random.split(key, 4)

    params = init_params(k_params, I, H, O)
    x = jax.random.normal(k_x, (B, I), jnp.float32)
    h_old = jax.random.normal(k_h, (B, H), jnp.float32)
    h2_old = jax.random.normal(k_h2, (B, H), jnp.float32)

    step = jax.jit(tlrnn_as_sc_forward)
    out, h_new, h2_new = step(x, h_old, h2_old, params)
    jax.block_until_ready((out, h_new, h2_new))

    ref_out, ref_h, ref_h2 = reference_forward(x, h_old, h2_old, params)
    assert out.shape == (B, O) and h_new.shape == (B, H) and h2_new.shape == (B, H)
    # bf16 MXU operands with f32 accumulation => loose-but-safe tolerance vs f32 ref.
    assert jnp.allclose(out, ref_out, atol=2e-2, rtol=2e-2), \
        float(jnp.max(jnp.abs(out - ref_out)))
    assert jnp.allclose(h_new, ref_h, atol=2e-2, rtol=2e-2), \
        float(jnp.max(jnp.abs(h_new - ref_h)))
    assert jnp.allclose(h2_new, ref_h2, atol=2e-2, rtol=2e-2), \
        float(jnp.max(jnp.abs(h2_new - ref_h2)))

    print("KERNEL_OK")
</pallas_src>

<mosaic_0001>
module attributes {stable_mosaic.version = 11 : i64} {
  func.func @_tlrnn_step_kernel(%arg0: i32, %arg1: memref<8x128xf32, #tpu.memory_space<vmem>>, %arg2: memref<8x128xf32, #tpu.memory_space<vmem>>, %arg3: memref<8x128xf32, #tpu.memory_space<vmem>>, %arg4: memref<128x128xbf16, #tpu.memory_space<vmem>>, %arg5: memref<1x128xf32, #tpu.memory_space<vmem>>, %arg6: memref<128x128xbf16, #tpu.memory_space<vmem>>, %arg7: memref<128x128xbf16, #tpu.memory_space<vmem>>, %arg8: memref<1x128xf32, #tpu.memory_space<vmem>>, %arg9: memref<128x128xbf16, #tpu.memory_space<vmem>>, %arg10: memref<128x128xbf16, #tpu.memory_space<vmem>>, %arg11: memref<1x128xf32, #tpu.memory_space<vmem>>, %arg12: memref<8x128xf32, #tpu.memory_space<vmem>>, %arg13: memref<8x128xf32, #tpu.memory_space<vmem>>, %arg14: memref<8x128xf32, #tpu.memory_space<vmem>>) attributes {dimension_semantics = [#tpu.dimension_semantics<parallel>], iteration_bounds = array<i64: 1>, scalar_prefetch = 0 : i64, scratch_operands = 0 : i64, tpu.core_type = #tpu.core_type<tc>, window_params = [{transform_indices = @transform_0, window_bounds = array<i64: 8, 128>}, {transform_indices = @transform_1, window_bounds = array<i64: 8, 128>}, {transform_indices = @transform_2, window_bounds = array<i64: 8, 128>}, {pipeline_mode = #tpu.pipeline_mode<synchronous>, transform_indices = @transform_3, window_bounds = array<i64: 128, 128>}, {pipeline_mode = #tpu.pipeline_mode<synchronous>, transform_indices = @transform_4, window_bounds = array<i64: 1, 128>}, {pipeline_mode = #tpu.pipeline_mode<synchronous>, transform_indices = @transform_5, window_bounds = array<i64: 128, 128>}, {pipeline_mode = #tpu.pipeline_mode<synchronous>, transform_indices = @transform_6, window_bounds = array<i64: 128, 128>}, {pipeline_mode = #tpu.pipeline_mode<synchronous>, transform_indices = @transform_7, window_bounds = array<i64: 1, 128>}, {pipeline_mode = #tpu.pipeline_mode<synchronous>, transform_indices = @transform_8, window_bounds = array<i64: 128, 128>}, {pipeline_mode = #tpu.pipeline_mode<synchronous>, transform_indices = @transform_9, window_bounds = array<i64: 128, 128>}, {pipeline_mode = #tpu.pipeline_mode<synchronous>, transform_indices = @transform_10, window_bounds = array<i64: 1, 128>}, {transform_indices = @transform_11, window_bounds = array<i64: 8, 128>}, {transform_indices = @transform_12, window_bounds = array<i64: 8, 128>}, {transform_indices = @transform_13, window_bounds = array<i64: 8, 128>}]} {
    %c0 = arith.constant 0 : index
    %c0_0 = arith.constant 0 : index
    %0 = vector.load %arg1[%c0, %c0_0] : memref<8x128xf32, #tpu.memory_space<vmem>>, vector<8x128xf32>
    %c0_1 = arith.constant 0 : index
    %c0_2 = arith.constant 0 : index
    %1 = vector.load %arg2[%c0_1, %c0_2] : memref<8x128xf32, #tpu.memory_space<vmem>>, vector<8x128xf32>
    %c0_3 = arith.constant 0 : index
    %c0_4 = arith.constant 0 : index
    %2 = vector.load %arg3[%c0_3, %c0_4] : memref<8x128xf32, #tpu.memory_space<vmem>>, vector<8x128xf32>
    %3 = arith.truncf %0 : vector<8x128xf32> to vector<8x128xbf16>
    %c0_5 = arith.constant 0 : index
    %c0_6 = arith.constant 0 : index
    %4 = vector.load %arg4[%c0_5, %c0_6] : memref<128x128xbf16, #tpu.memory_space<vmem>>, vector<128x128xbf16>
    %cst = arith.constant dense<0.000000e+00> : vector<8x128xf32>
    %5 = tpu.matmul %3, %4, %cst {dimension_numbers = #tpu.dot_dimension_numbers<[1], [0], [0], [1], [0, 0, 1, 1], [], []>} : vector<8x128xbf16>, vector<128x128xbf16>, vector<8x128xf32> -> vector<8x128xf32>
    %6 = arith.truncf %1 : vector<8x128xf32> to vector<8x128xbf16>
    %c0_7 = arith.constant 0 : index
    %c0_8 = arith.constant 0 : index
    %7 = vector.load %arg6[%c0_7, %c0_8] : memref<128x128xbf16, #tpu.memory_space<vmem>>, vector<128x128xbf16>
    %cst_9 = arith.constant dense<0.000000e+00> : vector<8x128xf32>
    %8 = tpu.matmul %6, %7, %cst_9 {dimension_numbers = #tpu.dot_dimension_numbers<[1], [0], [0], [1], [0, 0, 1, 1], [], []>} : vector<8x128xbf16>, vector<128x128xbf16>, vector<8x128xf32> -> vector<8x128xf32>
    %9 = arith.addf %5, %8 : vector<8x128xf32>
    %cst_10 = arith.constant 1.500000e-01 : f32
    %10 = vector.broadcast %cst_10 : f32 to vector<8x128xf32>
    %11 = arith.mulf %10, %1 : vector<8x128xf32>
    %12 = arith.subf %9, %11 : vector<8x128xf32>
    %c0_11 = arith.constant 0 : index
    %c0_12 = arith.constant 0 : index
    %13 = vector.load %arg5[%c0_11, %c0_12] : memref<1x128xf32, #tpu.memory_space<vmem>>, vector<1x128xf32>
    %14 = vector.broadcast %13 : vector<1x128xf32> to vector<8x128xf32>
    %15 = arith.addf %12, %14 : vector<8x128xf32>
    %16 = math.tanh %15 : vector<8x128xf32>
    %cst_13 = arith.constant 1.000000e-01 : f32
    %17 = vector.broadcast %cst_13 : f32 to vector<8x128xf32>
    %18 = arith.mulf %17, %16 : vector<8x128xf32>
    %19 = arith.addf %1, %18 : vector<8x128xf32>
    %20 = arith.truncf %19 : vector<8x128xf32> to vector<8x128xbf16>
    %c0_14 = arith.constant 0 : index
    %c0_15 = arith.constant 0 : index
    %21 = vector.load %arg9[%c0_14, %c0_15] : memref<128x128xbf16, #tpu.memory_space<vmem>>, vector<128x128xbf16>
    %cst_16 = arith.constant dense<0.000000e+00> : vector<8x128xf32>
    %22 = tpu.matmul %20, %21, %cst_16 {dimension_numbers = #tpu.dot_dimension_numbers<[1], [0], [0], [1], [0, 0, 1, 1], [], []>} : vector<8x128xbf16>, vector<128x128xbf16>, vector<8x128xf32> -> vector<8x128xf32>
    %23 = arith.truncf %2 : vector<8x128xf32> to vector<8x128xbf16>
    %c0_17 = arith.constant 0 : index
    %c0_18 = arith.constant 0 : index
    %24 = vector.load %arg7[%c0_17, %c0_18] : memref<128x128xbf16, #tpu.memory_space<vmem>>, vector<128x128xbf16>
    %cst_19 = arith.constant dense<0.000000e+00> : vector<8x128xf32>
    %25 = tpu.matmul %23, %24, %cst_19 {dimension_numbers = #tpu.dot_dimension_numbers<[1], [0], [0], [1], [0, 0, 1, 1], [], []>} : vector<8x128xbf16>, vector<128x128xbf16>, vector<8x128xf32> -> vector<8x128xf32>
    %26 = arith.addf %22, %25 : vector<8x128xf32>
    %27 = arith.addf %19, %2 : vector<8x128xf32>
    %cst_20 = arith.constant 1.500000e-01 : f32
    %28 = vector.broadcast %cst_20 : f32 to vector<8x128xf32>
    %29 = arith.mulf %28, %27 : vector<8x128xf32>
    %30 = arith.subf %26, %29 : vector<8x128xf32>
    %c0_21 = arith.constant 0 : index
    %c0_22 = arith.constant 0 : index
    %31 = vector.load %arg8[%c0_21, %c0_22] : memref<1x128xf32, #tpu.memory_space<vmem>>, vector<1x128xf32>
    %32 = vector.broadcast %31 : vector<1x128xf32> to vector<8x128xf32>
    %33 = arith.addf %30, %32 : vector<8x128xf32>
    %34 = math.tanh %33 : vector<8x128xf32>
    %cst_23 = arith.constant 1.000000e-01 : f32
    %35 = vector.broadcast %cst_23 : f32 to vector<8x128xf32>
    %36 = arith.mulf %35, %34 : vector<8x128xf32>
    %37 = arith.addf %2, %36 : vector<8x128xf32>
    %38 = arith.truncf %37 : vector<8x128xf32> to vector<8x128xbf16>
    %c0_24 = arith.constant 0 : index
    %c0_25 = arith.constant 0 : index
    %39 = vector.load %arg10[%c0_24, %c0_25] : memref<128x128xbf16, #tpu.memory_space<vmem>>, vector<128x128xbf16>
    %cst_26 = arith.constant dense<0.000000e+00> : vector<8x128xf32>
    %40 = tpu.matmul %38, %39, %cst_26 {dimension_numbers = #tpu.dot_dimension_numbers<[1], [0], [0], [1], [0, 0, 1, 1], [], []>} : vector<8x128xbf16>, vector<128x128xbf16>, vector<8x128xf32> -> vector<8x128xf32>
    %c0_27 = arith.constant 0 : index
    %c0_28 = arith.constant 0 : index
    %41 = vector.load %arg11[%c0_27, %c0_28] : memref<1x128xf32, #tpu.memory_space<vmem>>, vector<1x128xf32>
    %42 = vector.broadcast %41 : vector<1x128xf32> to vector<8x128xf32>
    %43 = arith.addf %40, %42 : vector<8x128xf32>
    %c0_29 = arith.constant 0 : index
    %c0_30 = arith.constant 0 : index
    %44 = vector.load %arg12[%c0_29, %c0_30] : memref<8x128xf32, #tpu.memory_space<vmem>>, vector<8x128xf32>
    tpu.vector_store %arg12[%c0_29, %c0_30], %43 {strides = array<i32>} : memref<8x128xf32, #tpu.memory_space<vmem>>, vector<8x128xf32>,
    %c0_31 = arith.constant 0 : index
    %c0_32 = arith.constant 0 : index
    %45 = vector.load %arg13[%c0_31, %c0_32] : memref<8x128xf32, #tpu.memory_space<vmem>>, vector<8x128xf32>
    tpu.vector_store %arg13[%c0_31, %c0_32], %19 {strides = array<i32>} : memref<8x128xf32, #tpu.memory_space<vmem>>, vector<8x128xf32>,
    %c0_33 = arith.constant 0 : index
    %c0_34 = arith.constant 0 : index
    %46 = vector.load %arg14[%c0_33, %c0_34] : memref<8x128xf32, #tpu.memory_space<vmem>>, vector<8x128xf32>
    tpu.vector_store %arg14[%c0_33, %c0_34], %37 {strides = array<i32>} : memref<8x128xf32, #tpu.memory_space<vmem>>, vector<8x128xf32>,
    return
  }
  func.func @transform_0(%arg0: i32) -> (i32, i32) {
    %c0_i32 = arith.constant 0 : i32
    %c0_i32_0 = arith.constant 0 : i32
    return %arg0, %c0_i32 : i32, i32
  }
  func.func @transform_1(%arg0: i32) -> (i32, i32) {
    %c0_i32 = arith.constant 0 : i32
    %c0_i32_0 = arith.constant 0 : i32
    return %arg0, %c0_i32 : i32, i32
  }
  func.func @transform_2(%arg0: i32) -> (i32, i32) {
    %c0_i32 = arith.constant 0 : i32
    %c0_i32_0 = arith.constant 0 : i32
    return %arg0, %c0_i32 : i32, i32
  }
  func.func @transform_3(%arg0: i32) -> (i32, i32) {
    %c0_i32 = arith.constant 0 : i32
    %c0_i32_0 = arith.constant 0 : i32
    %c0_i32_1 = arith.constant 0 : i32
    return %c0_i32, %c0_i32_0 : i32, i32
  }
  func.func @transform_4(%arg0: i32) -> (i32, i32) {
    %c0_i32 = arith.constant 0 : i32
    %c0_i32_0 = arith.constant 0 : i32
    %c0_i32_1 = arith.constant 0 : i32
    return %c0_i32, %c0_i32_0 : i32, i32
  }
  func.func @transform_5(%arg0: i32) -> (i32, i32) {
    %c0_i32 = arith.constant 0 : i32
    %c0_i32_0 = arith.constant 0 : i32
    %c0_i32_1 = arith.constant 0 : i32
    return %c0_i32, %c0_i32_0 : i32, i32
  }
  func.func @transform_6(%arg0: i32) -> (i32, i32) {
    %c0_i32 = arith.constant 0 : i32
    %c0_i32_0 = arith.constant 0 : i32
    %c0_i32_1 = arith.constant 0 : i32
    return %c0_i32, %c0_i32_0 : i32, i32
  }
  func.func @transform_7(%arg0: i32) -> (i32, i32) {
    %c0_i32 = arith.constant 0 : i32
    %c0_i32_0 = arith.constant 0 : i32
    %c0_i32_1 = arith.constant 0 : i32
    return %c0_i32, %c0_i32_0 : i32, i32
  }
  func.func @transform_8(%arg0: i32) -> (i32, i32) {
    %c0_i32 = arith.constant 0 : i32
    %c0_i32_0 = arith.constant 0 : i32
    %c0_i32_1 = arith.constant 0 : i32
    return %c0_i32, %c0_i32_0 : i32, i32
  }
  func.func @transform_9(%arg0: i32) -> (i32, i32) {
    %c0_i32 = arith.constant 0 : i32
    %c0_i32_0 = arith.constant 0 : i32
    %c0_i32_1 = arith.constant 0 : i32
    return %c0_i32, %c0_i32_0 : i32, i32
  }
  func.func @transform_10(%arg0: i32) -> (i32, i32) {
    %c0_i32 = arith.constant 0 : i32
    %c0_i32_0 = arith.constant 0 : i32
    %c0_i32_1 = arith.constant 0 : i32
    return %c0_i32, %c0_i32_0 : i32, i32
  }
  func.func @transform_11(%arg0: i32) -> (i32, i32) {
    %c0_i32 = arith.constant 0 : i32
    %c0_i32_0 = arith.constant 0 : i32
    return %arg0, %c0_i32 : i32, i32
  }
  func.func @transform_12(%arg0: i32) -> (i32, i32) {
    %c0_i32 = arith.constant 0 : i32
    %c0_i32_0 = arith.constant 0 : i32
    return %arg0, %c0_i32 : i32, i32
  }
  func.func @transform_13(%arg0: i32) -> (i32, i32) {
    %c0_i32 = arith.constant 0 : i32
    %c0_i32_0 = arith.constant 0 : i32
    return %arg0, %c0_i32 : i32, i32
  }
}

</mosaic_0001>

<llo_original>
// kernel: tlrnn_as_sc_forward.1
$region0: #{tlrnn_as_sc_forward.1}
  #allocation0 [shape = 'u32[]', space=smem, size = 0x4, offset = 0x4, fixed_abs, tag = 'smem constant byte address 0x4 - core index']
  #allocation1 [shape = 'u32[144,128]{1,0:T(1,128)}', space=vmem, size = 0x12000, scoped, tag = 'internal scratch']
  %s0 = inlined_call_operand.vmem [shape: f32[8,128], index: 0, kind: input, shape index: {}]
  %s1 = inlined_call_operand.vmem [shape: f32[8,128], index: 1, kind: input, shape index: {}]
  %s2 = inlined_call_operand.vmem [shape: f32[8,128], index: 2, kind: input, shape index: {}]
  %s3 = inlined_call_operand.vmem [shape: bf16[128,128], index: 3, kind: input, shape index: {}]
  %s4 = inlined_call_operand.vmem [shape: f32[1,128], index: 4, kind: input, shape index: {}]
  %s5 = inlined_call_operand.vmem [shape: bf16[128,128], index: 5, kind: input, shape index: {}]
  %s6 = inlined_call_operand.vmem [shape: bf16[128,128], index: 6, kind: input, shape index: {}]
  %s7 = inlined_call_operand.vmem [shape: f32[1,128], index: 7, kind: input, shape index: {}]
  %s8 = inlined_call_operand.vmem [shape: bf16[128,128], index: 8, kind: input, shape index: {}]
  %s9 = inlined_call_operand.vmem [shape: bf16[128,128], index: 9, kind: input, shape index: {}]
  %s10 = inlined_call_operand.vmem [shape: f32[1,128], index: 10, kind: input, shape index: {}]
  %s11 = inlined_call_operand.hbm [shape: f32[8,128], index: 11, kind: output, shape index: {0}]
  %s12 = inlined_call_operand.hbm [shape: f32[8,128], index: 12, kind: output, shape index: {1}]
  %s13 = inlined_call_operand.hbm [shape: f32[8,128], index: 13, kind: output, shape index: {2}]
  %14 = xla_tuple %s11, %s12, %s13
  %s15 = sld [smem:[#allocation0]]
  $region70: #{tlrnn_as_sc_forward.1} parent=0
    _
  %s17 = ssub.s32 1, %s15
  %s18 = scalar_select 0, %s17, %s15
  $region1: #{tlrnn_as_sc_forward.1} parent=0
    #allocation2 [shape = 'u8[4096]{0}', space=vmem, size = 0x1000, scoped, tag = 'output window, operand 0, single buffered']
    #allocation3 [shape = 's32[1]{0}', space=sflag, size = 0x4, scoped, tag = 'scoped memory for tlrnn_as_sc_forward.1']
    #allocation4 [shape = 'u8[4096]{0}', space=vmem, size = 0x1000, scoped, tag = 'output window, operand 1, single buffered']
    #allocation5 [shape = 's32[1]{0}', space=sflag, size = 0x4, scoped, tag = 'scoped memory for tlrnn_as_sc_forward.1']
    #allocation6 [shape = 'u8[4096]{0}', space=vmem, size = 0x1000, scoped, tag = 'output window, operand 2, single buffered']
    %19 = vsyncpa [#allocation3], 0
    %20 = vsyncpa [#allocation5], 0
    // Predicated region
    $region2: #{tlrnn_as_sc_forward.1} parent=1 // pred_check
      _
    $region3: #{tlrnn_as_sc_forward.1} parent=1 // pred_check_branch
      %22 = sbr.rel (0) target = $region5
    $region4: #{tlrnn_as_sc_forward.1} parent=1 // pred_region
      _
    $region5: #{tlrnn_as_sc_forward.1} parent=1 // pred_fallthru
      _
    // Predicated region
    $region6: #{tlrnn_as_sc_forward.1} parent=1 // pred_check
      _
    $region7: #{tlrnn_as_sc_forward.1} parent=1 // pred_check_branch
      %24 = sbr.rel (0) target = $region9
    $region8: #{tlrnn_as_sc_forward.1} parent=1 // pred_region
      _
    $region9: #{tlrnn_as_sc_forward.1} parent=1 // pred_fallthru
      _
    // Predicated region
    $region10: #{tlrnn_as_sc_forward.1} parent=1 // pred_check
      _
    $region11: #{tlrnn_as_sc_forward.1} parent=1 // pred_check_branch
      %26 = sbr.rel (0) target = $region13
    $region12: #{tlrnn_as_sc_forward.1} parent=1 // pred_region
      _
    $region13: #{tlrnn_as_sc_forward.1} parent=1 // pred_fallthru
      _
    // Predicated region
    $region14: #{tlrnn_as_sc_forward.1} parent=1 // pred_check
      _
    $region15: #{tlrnn_as_sc_forward.1} parent=1 // pred_check_branch
      %28 = sbr.rel (0) target = $region17
    $region16: #{tlrnn_as_sc_forward.1} parent=1 // pred_region
      _
    $region17: #{tlrnn_as_sc_forward.1} parent=1 // pred_fallthru
      _
    // Predicated region
    $region18: #{tlrnn_as_sc_forward.1} parent=1 // pred_check
      _
    $region19: #{tlrnn_as_sc_forward.1} parent=1 // pred_check_branch
      %30 = sbr.rel (0) target = $region21
    $region20: #{tlrnn_as_sc_forward.1} parent=1 // pred_region
      _
    $region21: #{tlrnn_as_sc_forward.1} parent=1 // pred_fallthru
      _
    // Predicated region
    $region22: #{tlrnn_as_sc_forward.1} parent=1 // pred_check
      _
    $region23: #{tlrnn_as_sc_forward.1} parent=1 // pred_check_branch
      %32 = sbr.rel (0) target = $region25
    $region24: #{tlrnn_as_sc_forward.1} parent=1 // pred_region
      _
    $region25: #{tlrnn_as_sc_forward.1} parent=1 // pred_fallthru
      _
    // Predicated region
    $region26: #{tlrnn_as_sc_forward.1} parent=1 // pred_check
      _
    $region27: #{tlrnn_as_sc_forward.1} parent=1 // pred_check_branch
      %34 = sbr.rel (0) target = $region29
    $region28: #{tlrnn_as_sc_forward.1} parent=1 // pred_region
      _
    $region29: #{tlrnn_as_sc_forward.1} parent=1 // pred_fallthru
      _
    // Predicated region
    $region30: #{tlrnn_as_sc_forward.1} parent=1 // pred_check
      _
    $region31: #{tlrnn_as_sc_forward.1} parent=1 // pred_check_branch
      %36 = sbr.rel (0) target = $region33
    $region32: #{tlrnn_as_sc_forward.1} parent=1 // pred_region
      _
    $region33: #{tlrnn_as_sc_forward.1} parent=1 // pred_fallthru
      _
    // Predicated region
    $region34: #{tlrnn_as_sc_forward.1} parent=1 // pred_check
      _
    $region35: #{tlrnn_as_sc_forward.1} parent=1 // pred_check_branch
      %38 = sbr.rel (0) target = $region37
    $region36: #{tlrnn_as_sc_forward.1} parent=1 // pred_region
      _
    $region37: #{tlrnn_as_sc_forward.1} parent=1 // pred_fallthru
      _
    // Predicated region
    $region38: #{tlrnn_as_sc_forward.1} parent=1 // pred_check
      _
    $region39: #{tlrnn_as_sc_forward.1} parent=1 // pred_check_branch
      %40 = sbr.rel (0) target = $region41
    $region40: #{tlrnn_as_sc_forward.1} parent=1 // pred_region
      _
    $region41: #{tlrnn_as_sc_forward.1} parent=1 // pred_fallthru
      _
    // Predicated region
    $region42: #{tlrnn_as_sc_forward.1} parent=1 // pred_check
      _
    $region43: #{tlrnn_as_sc_forward.1} parent=1 // pred_check_branch
      %42 = sbr.rel (0) target = $region45
    $region44: #{tlrnn_as_sc_forward.1} parent=1 // pred_region
      _
    $region45: #{tlrnn_as_sc_forward.1} parent=1 // pred_fallthru
      _
    %v44 = vld [vmem:[%s0] sm:$0xff]
    %v45 = vld [vmem:[%s1] sm:$0xff]
    %v46 = vld [vmem:[%s2] sm:$0xff]
    %v47 = vpack.c.bf16 %v44, %v44
    %v48 = vld [vmem:[%s3] sm:$0xf]
    %v49 = vld [vmem:[%s3 + $0x4] sm:$0xf]
    %v50 = vld [vmem:[%s3 + $0x8] sm:$0xf]
    %v51 = vld [vmem:[%s3 + $0xc] sm:$0xf]
    %v52 = vld [vmem:[%s3 + $0x10] sm:$0xf]
    %v53 = vld [vmem:[%s3 + $0x14] sm:$0xf]
    %v54 = vld [vmem:[%s3 + $0x18] sm:$0xf]
    %v55 = vld [vmem:[%s3 + $0x1c] sm:$0xf]
    %v56 = vld [vmem:[%s3 + $0x20] sm:$0xf]
    %v57 = vld [vmem:[%s3 + $0x24] sm:$0xf]
    %v58 = vld [vmem:[%s3 + $0x28] sm:$0xf]
    %v59 = vld [vmem:[%s3 + $0x2c] sm:$0xf]
    %v60 = vld [vmem:[%s3 + $0x30] sm:$0xf]
    %v61 = vld [vmem:[%s3 + $0x34] sm:$0xf]
    %v62 = vld [vmem:[%s3 + $0x38] sm:$0xf]
    %v63 = vld [vmem:[%s3 + $0x3c] sm:$0xf]
    %v64 = vpack.c.bf16 %v45, %v45
    %v65 = vld [vmem:[%s5] sm:$0xf]
    %v66 = vld [vmem:[%s5 + $0x4] sm:$0xf]
    %v67 = vld [vmem:[%s5 + $0x8] sm:$0xf]
    %v68 = vld [vmem:[%s5 + $0xc] sm:$0xf]
    %v69 = vld [vmem:[%s5 + $0x10] sm:$0xf]
    %v70 = vld [vmem:[%s5 + $0x14] sm:$0xf]
    %v71 = vld [vmem:[%s5 + $0x18] sm:$0xf]
    %v72 = vld [vmem:[%s5 + $0x1c] sm:$0xf]
    %v73 = vld [vmem:[%s5 + $0x20] sm:$0xf]
    %v74 = vld [vmem:[%s5 + $0x24] sm:$0xf]
    %v75 = vld [vmem:[%s5 + $0x28] sm:$0xf]
    %v76 = vld [vmem:[%s5 + $0x2c] sm:$0xf]
    %v77 = vld [vmem:[%s5 + $0x30] sm:$0xf]
    %v78 = vld [vmem:[%s5 + $0x34] sm:$0xf]
    %v79 = vld [vmem:[%s5 + $0x38] sm:$0xf]
    %v80 = vld [vmem:[%s5 + $0x3c] sm:$0xf]
    %v97 = vunpack.c.l.b16 %v65
    %v98 = vunpack.c.l.b16 %v66
    %v99 = vunpack.c.l.b16 %v67
    %v100 = vunpack.c.l.b16 %v68
    %v101 = vunpack.c.l.b16 %v69
    %v102 = vunpack.c.l.b16 %v70
    %v103 = vunpack.c.l.b16 %v71
    %v104 = vunpack.c.l.b16 %v72
    %v105 = vunpack.c.l.b16 %v73
    %v106 = vunpack.c.l.b16 %v74
    %v107 = vunpack.c.l.b16 %v75
    %v108 = vunpack.c.l.b16 %v76
    %v109 = vunpack.c.l.b16 %v77
    %v110 = vunpack.c.l.b16 %v78
    %v111 = vunpack.c.l.b16 %v79
    %v112 = vunpack.c.l.b16 %v80
    %v113 = vpack.c.b16 %v98, %v97
    %v114 = vpack.c.b16 %v100, %v99
    %v115 = vpack.c.b16 %v102, %v101
    %v116 = vpack.c.b16 %v104, %v103
    %v117 = vpack.c.b16 %v106, %v105
    %v118 = vpack.c.b16 %v108, %v107
    %v119 = vpack.c.b16 %v110, %v109
    %v120 = vpack.c.b16 %v112, %v111
    %129 = vmatprep.subr.bf16.mxu0 0
    %130 = vmatpush1.bf16.msra.mxu0 %v113
    %131 = vmatprep.subr.bf16.mxu0 0
    %132 = vmatpush1.bf16.msra.mxu0 %v114
    %133 = vmatprep.subr.bf16.mxu0 0
    %134 = vmatpush1.bf16.msra.mxu0 %v115
    %135 = vmatprep.subr.bf16.mxu0 0
    %136 = vmatpush1.bf16.msra.mxu0 %v116
    %137 = vmatprep.subr.bf16.mxu0 0
    %138 = vmatpush1.bf16.msra.mxu0 %v117
    %139 = vmatprep.subr.bf16.mxu0 0
    %140 = vmatpush1.bf16.msra.mxu0 %v118
    %141 = vmatprep.subr.bf16.mxu0 0
    %142 = vmatpush1.bf16.msra.mxu0 %v119
    %143 = vmatprep.subr.bf16.mxu0 0
    %144 = vmatpush1.bf16.msra.mxu0 %v120
    %145 = vmatprep.subr.bf16.mxu0 0
    %146 = vmatpush1.bf16.msra.mxu0 0
    %147 = vmatprep.subr.bf16.mxu0 0
    %148 = vmatpush1.bf16.msra.mxu0 0
    %149 = vmatprep.subr.bf16.mxu0 0
    %150 = vmatpush1.bf16.msra.mxu0 0
    %151 = vmatprep.subr.bf16.mxu0 0
    %152 = vmatpush1.bf16.msra.mxu0 0
    %153 = vmatprep.subr.bf16.mxu0 0
    %154 = vmatpush1.bf16.msra.mxu0 0
    %155 = vmatprep.subr.bf16.mxu0 0
    %156 = vmatpush1.bf16.msra.mxu0 0
    %157 = vmatprep.subr.bf16.mxu0 0
    %158 = vmatpush1.bf16.msra.mxu0 0
    %159 = vmatprep.subr.bf16.mxu0 0
    %160 = vmatpush1.bf16.msra.mxu0 0
    %161 = vmatprep.mubr.bf16.mxu0 0
    %162 = vmatmul.mubr.bf16.gmra.mrb[0].mxu0 %v64
    %v163 = vpop.f32.mrb[0].mxu0
    %v164 = vadd.f32 0.0, %v163
    %v165 = vpop.f32.mrb[0].mxu0
    %v166 = vpop.f32.mrb[0].mxu0
    %v167 = vpop.f32.mrb[0].mxu0
    %168 = vdwg.mxu0
    %v185 = vunpack.c.l.b16 %v48
    %v186 = vunpack.c.l.b16 %v49
    %v187 = vunpack.c.l.b16 %v50
    %v188 = vunpack.c.l.b16 %v51
    %v189 = vunpack.c.l.b16 %v52
    %v190 = vunpack.c.l.b16 %v53
    %v191 = vunpack.c.l.b16 %v54
    %v192 = vunpack.c.l.b16 %v55
    %v193 = vunpack.c.l.b16 %v56
    %v194 = vunpack.c.l.b16 %v57
    %v195 = vunpack.c.l.b16 %v58
    %v196 = vunpack.c.l.b16 %v59
    %v197 = vunpack.c.l.b16 %v60
    %v198 = vunpack.c.l.b16 %v61
    %v199 = vunpack.c.l.b16 %v62
    %v200 = vunpack.c.l.b16 %v63
    %v201 = vpack.c.b16 %v186, %v185
    %v202 = vpack.c.b16 %v188, %v187
    %v203 = vpack.c.b16 %v190, %v189
    %v204 = vpack.c.b16 %v192, %v191
    %v205 = vpack.c.b16 %v194, %v193
    %v206 = vpack.c.b16 %v196, %v195
    %v207 = vpack.c.b16 %v198, %v197
    %v208 = vpack.c.b16 %v200, %v199
    %217 = vmatprep.subr.bf16.mxu0 0
    %218 = vmatpush1.bf16.msra.mxu0 %v201
    %219 = vmatprep.subr.bf16.mxu0 0
    %220 = vmatpush1.bf16.msra.mxu0 %v202
    %221 = vmatprep.subr.bf16.mxu0 0
    %222 = vmatpush1.bf16.msra.mxu0 %v203
    %223 = vmatprep.subr.bf16.mxu0 0
    %224 = vmatpush1.bf16.msra.mxu0 %v204
    %225 = vmatprep.subr.bf16.mxu0 0
    %226 = vmatpush1.bf16.msra.mxu0 %v205
    %227 = vmatprep.subr.bf16.mxu0 0
    %228 = vmatpush1.bf16.msra.mxu0 %v206
    %229 = vmatprep.subr.bf16.mxu0 0
    %230 = vmatpush1.bf16.msra.mxu0 %v207
    %231 = vmatprep.subr.bf16.mxu0 0
    %232 = vmatpush1.bf16.msra.mxu0 %v208
    %233 = vmatprep.subr.bf16.mxu0 0
    %234 = vmatpush1.bf16.msra.mxu0 0
    %235 = vmatprep.subr.bf16.mxu0 0
    %236 = vmatpush1.bf16.msra.mxu0 0
    %237 = vmatprep.subr.bf16.mxu0 0
    %238 = vmatpush1.bf16.msra.mxu0 0
    %239 = vmatprep.subr.bf16.mxu0 0
    %240 = vmatpush1.bf16.msra.mxu0 0
    %241 = vmatprep.subr.bf16.mxu0 0
    %242 = vmatpush1.bf16.msra.mxu0 0
    %243 = vmatprep.subr.bf16.mxu0 0
    %244 = vmatpush1.bf16.msra.mxu0 0
    %245 = vmatprep.subr.bf16.mxu0 0
    %246 = vmatpush1.bf16.msra.mxu0 0
    %247 = vmatprep.subr.bf16.mxu0 0
    %248 = vmatpush1.bf16.msra.mxu0 0
    %249 = vmatprep.mubr.bf16.mxu0 0
    %250 = vmatmul.mubr.bf16.gmra.mrb[0].mxu0 %v47
    %v251 = vpop.f32.mrb[0].mxu0
    %v252 = vadd.f32 %v164, %v251
    %v253 = vpop.f32.mrb[0].mxu0
    %v254 = vpop.f32.mrb[0].mxu0
    %v255 = vpop.f32.mrb[0].mxu0
    %256 = vdwg.mxu0
    %v257 = vmul.f32 %v45, 0.15
    %v258 = vsub.f32 %v252, %v257
    %v259 = vld [vmem:[%s4] sm:$0x1]
    %v261 = vlaneseq
    %v262 = vshrl.u32 %v261, 7
    %v263 = vsub.s32 0, %v262
    %v264 = vrot.slane %v259, %v263
    %v266 = vadd.f32 %v258, %v264
    %v267 = vtanh.pop %v266
    %v268 = vmul.f32 %v267, 0.1
    %v269 = vadd.f32 %v45, %v268
    %v270 = vpack.c.bf16 %v269, %v269
    %v271 = vld [vmem:[%s8] sm:$0xf]
    %v272 = vld [vmem:[%s8 + $0x4] sm:$0xf]
    %v273 = vld [vmem:[%s8 + $0x8] sm:$0xf]
    %v274 = vld [vmem:[%s8 + $0xc] sm:$0xf]
    %v275 = vld [vmem:[%s8 + $0x10] sm:$0xf]
    %v276 = vld [vmem:[%s8 + $0x14] sm:$0xf]
    %v277 = vld [vmem:[%s8 + $0x18] sm:$0xf]
    %v278 = vld [vmem:[%s8 + $0x1c] sm:$0xf]
    %v279 = vld [vmem:[%s8 + $0x20] sm:$0xf]
    %v280 = vld [vmem:[%s8 + $0x24] sm:$0xf]
    %v281 = vld [vmem:[%s8 + $0x28] sm:$0xf]
    %v282 = vld [vmem:[%s8 + $0x2c] sm:$0xf]
    %v283 = vld [vmem:[%s8 + $0x30] sm:$0xf]
    %v284 = vld [vmem:[%s8 + $0x34] sm:$0xf]
    %v285 = vld [vmem:[%s8 + $0x38] sm:$0xf]
    %v286 = vld [vmem:[%s8 + $0x3c] sm:$0xf]
    %v287 = vpack.c.bf16 %v46, %v46
    %v288 = vld [vmem:[%s6] sm:$0xf]
    %v289 = vld [vmem:[%s6 + $0x4] sm:$0xf]
    %v290 = vld [vmem:[%s6 + $0x8] sm:$0xf]
    %v291 = vld [vmem:[%s6 + $0xc] sm:$0xf]
    %v292 = vld [vmem:[%s6 + $0x10] sm:$0xf]
    %v293 = vld [vmem:[%s6 + $0x14] sm:$0xf]
    %v294 = vld [vmem:[%s6 + $0x18] sm:$0xf]
    %v295 = vld [vmem:[%s6 + $0x1c] sm:$0xf]
    %v296 = vld [vmem:[%s6 + $0x20] sm:$0xf]
    %v297 = vld [vmem:[%s6 + $0x24] sm:$0xf]
    %v298 = vld [vmem:[%s6 + $0x28] sm:$0xf]
    %v299 = vld [vmem:[%s6 + $0x2c] sm:$0xf]
    %v300 = vld [vmem:[%s6 + $0x30] sm:$0xf]
    %v301 = vld [vmem:[%s6 + $0x34] sm:$0xf]
    %v302 = vld [vmem:[%s6 + $0x38] sm:$0xf]
    %v303 = vld [vmem:[%s6 + $0x3c] sm:$0xf]
    %v320 = vunpack.c.l.b16 %v288
    %v321 = vunpack.c.l.b16 %v289
    %v322 = vunpack.c.l.b16 %v290
    %v323 = vunpack.c.l.b16 %v291
    %v324 = vunpack.c.l.b16 %v292
    %v325 = vunpack.c.l.b16 %v293
    %v326 = vunpack.c.l.b16 %v294
    %v327 = vunpack.c.l.b16 %v295
    %v328 = vunpack.c.l.b16 %v296
    %v329 = vunpack.c.l.b16 %v297
    %v330 = vunpack.c.l.b16 %v298
    %v331 = vunpack.c.l.b16 %v299
    %v332 = vunpack.c.l.b16 %v300
    %v333 = vunpack.c.l.b16 %v301
    %v334 = vunpack.c.l.b16 %v302
    %v335 = vunpack.c.l.b16 %v303
    %v336 = vpack.c.b16 %v321, %v320
    %v337 = vpack.c.b16 %v323, %v322
    %v338 = vpack.c.b16 %v325, %v324
    %v339 = vpack.c.b16 %v327, %v326
    %v340 = vpack.c.b16 %v329, %v328
    %v341 = vpack.c.b16 %v331, %v330
    %v342 = vpack.c.b16 %v333, %v332
    %v343 = vpack.c.b16 %v335, %v334
    %352 = vmatprep.subr.bf16.mxu0 0
    %353 = vmatpush1.bf16.msra.mxu0 %v336
    %354 = vmatprep.subr.bf16.mxu0 0
    %355 = vmatpush1.bf16.msra.mxu0 %v337
    %356 = vmatprep.subr.bf16.mxu0 0
    %357 = vmatpush1.bf16.msra.mxu0 %v338
    %358 = vmatprep.subr.bf16.mxu0 0
    %359 = vmatpush1.bf16.msra.mxu0 %v339
    %360 = vmatprep.subr.bf16.mxu0 0
    %361 = vmatpush1.bf16.msra.mxu0 %v340
    %362 = vmatprep.subr.bf16.mxu0 0
    %363 = vmatpush1.bf16.msra.mxu0 %v341
    %364 = vmatprep.subr.bf16.mxu0 0
    %365 = vmatpush1.bf16.msra.mxu0 %v342
    %366 = vmatprep.subr.bf16.mxu0 0
    %367 = vmatpush1.bf16.msra.mxu0 %v343
    %368 = vmatprep.subr.bf16.mxu0 0
    %369 = vmatpush1.bf16.msra.mxu0 0
    %370 = vmatprep.subr.bf16.mxu0 0
    %371 = vmatpush1.bf16.msra.mxu0 0
    %372 = vmatprep.subr.bf16.mxu0 0
    %373 = vmatpush1.bf16.msra.mxu0 0
    %374 = vmatprep.subr.bf16.mxu0 0
    %375 = vmatpush1.bf16.msra.mxu0 0
    %376 = vmatprep.subr.bf16.mxu0 0
    %377 = vmatpush1.bf16.msra.mxu0 0
    %378 = vmatprep.subr.bf16.mxu0 0
    %379 = vmatpush1.bf16.msra.mxu0 0
    %380 = vmatprep.subr.bf16.mxu0 0
    %381 = vmatpush1.bf16.msra.mxu0 0
    %382 = vmatprep.subr.bf16.mxu0 0
    %383 = vmatpush1.bf16.msra.mxu0 0
    %384 = vmatprep.mubr.bf16.mxu0 0
    %385 = vmatmul.mubr.bf16.gmra.mrb[0].mxu0 %v287
    %v386 = vpop.f32.mrb[0].mxu0
    %v387 = vadd.f32 0.0, %v386
    %v388 = vpop.f32.mrb[0].mxu0
    %v389 = vpop.f32.mrb[0].mxu0
    %v390 = vpop.f32.mrb[0].mxu0
    %391 = vdwg.mxu0
    %v408 = vunpack.c.l.b16 %v271
    %v409 = vunpack.c.l.b16 %v272
    %v410 = vunpack.c.l.b16 %v273
    %v411 = vunpack.c.l.b16 %v274
    %v412 = vunpack.c.l.b16 %v275
    %v413 = vunpack.c.l.b16 %v276
    %v414 = vunpack.c.l.b16 %v277
    %v415 = vunpack.c.l.b16 %v278
    %v416 = vunpack.c.l.b16 %v279
    %v417 = vunpack.c.l.b16 %v280
    %v418 = vunpack.c.l.b16 %v281
    %v419 = vunpack.c.l.b16 %v282
    %v420 = vunpack.c.l.b16 %v283
    %v421 = vunpack.c.l.b16 %v284
    %v422 = vunpack.c.l.b16 %v285
    %v423 = vunpack.c.l.b16 %v286
    %v424 = vpack.c.b16 %v409, %v408
    %v425 = vpack.c.b16 %v411, %v410
    %v426 = vpack.c.b16 %v413, %v412
    %v427 = vpack.c.b16 %v415, %v414
    %v428 = vpack.c.b16 %v417, %v416
    %v429 = vpack.c.b16 %v419, %v418
    %v430 = vpack.c.b16 %v421, %v420
    %v431 = vpack.c.b16 %v423, %v422
    %440 = vmatprep.subr.bf16.mxu0 0
    %441 = vmatpush1.bf16.msra.mxu0 %v424
    %442 = vmatprep.subr.bf16.mxu0 0
    %443 = vmatpush1.bf16.msra.mxu0 %v425
    %444 = vmatprep.subr.bf16.mxu0 0
    %445 = vmatpush1.bf16.msra.mxu0 %v426
    %446 = vmatprep.subr.bf16.mxu0 0
    %447 = vmatpush1.bf16.msra.mxu0 %v427
    %448 = vmatprep.subr.bf16.mxu0 0
    %449 = vmatpush1.bf16.msra.mxu0 %v428
    %450 = vmatprep.subr.bf16.mxu0 0
    %451 = vmatpush1.bf16.msra.mxu0 %v429
    %452 = vmatprep.subr.bf16.mxu0 0
    %453 = vmatpush1.bf16.msra.mxu0 %v430
    %454 = vmatprep.subr.bf16.mxu0 0
    %455 = vmatpush1.bf16.msra.mxu0 %v431
    %456 = vmatprep.subr.bf16.mxu0 0
    %457 = vmatpush1.bf16.msra.mxu0 0
    %458 = vmatprep.subr.bf16.mxu0 0
    %459 = vmatpush1.bf16.msra.mxu0 0
    %460 = vmatprep.subr.bf16.mxu0 0
    %461 = vmatpush1.bf16.msra.mxu0 0
    %462 = vmatprep.subr.bf16.mxu0 0
    %463 = vmatpush1.bf16.msra.mxu0 0
    %464 = vmatprep.subr.bf16.mxu0 0
    %465 = vmatpush1.bf16.msra.mxu0 0
    %466 = vmatprep.subr.bf16.mxu0 0
    %467 = vmatpush1.bf16.msra.mxu0 0
    %468 = vmatprep.subr.bf16.mxu0 0
    %469 = vmatpush1.bf16.msra.mxu0 0
    %470 = vmatprep.subr.bf16.mxu0 0
    %471 = vmatpush1.bf16.msra.mxu0 0
    %472 = vmatprep.mubr.bf16.mxu0 0
    %473 = vmatmul.mubr.bf16.gmra.mrb[0].mxu0 %v270
    %v474 = vpop.f32.mrb[0].mxu0
    %v475 = vadd.f32 %v387, %v474
    %v476 = vpop.f32.mrb[0].mxu0
    %v477 = vpop.f32.mrb[0].mxu0
    %v478 = vpop.f32.mrb[0].mxu0
    %479 = vdwg.mxu0
    %v480 = vadd.f32 %v269, %v46
    %v481 = vmul.f32 %v480, 0.15
    %v482 = vsub.f32 %v475, %v481
    %v483 = vld [vmem:[%s7] sm:$0x1]
    %v485 = vlaneseq
    %v486 = vshrl.u32 %v485, 7
    %v487 = vsub.s32 0, %v486
    %v488 = vrot.slane %v483, %v487
    %v490 = vadd.f32 %v482, %v488
    %v491 = vtanh.pop %v490
    %v492 = vmul.f32 %v491, 0.1
    %v493 = vadd.f32 %v46, %v492
    %v494 = vpack.c.bf16 %v493, %v493
    %v495 = vld [vmem:[%s9] sm:$0xf]
    %v496 = vld [vmem:[%s9 + $0x4] sm:$0xf]
    %v497 = vld [vmem:[%s9 + $0x8] sm:$0xf]
    %v498 = vld [vmem:[%s9 + $0xc] sm:$0xf]
    %v499 = vld [vmem:[%s9 + $0x10] sm:$0xf]
    %v500 = vld [vmem:[%s9 + $0x14] sm:$0xf]
    %v501 = vld [vmem:[%s9 + $0x18] sm:$0xf]
    %v502 = vld [vmem:[%s9 + $0x1c] sm:$0xf]
    %v503 = vld [vmem:[%s9 + $0x20] sm:$0xf]
    %v504 = vld [vmem:[%s9 + $0x24] sm:$0xf]
    %v505 = vld [vmem:[%s9 + $0x28] sm:$0xf]
    %v506 = vld [vmem:[%s9 + $0x2c] sm:$0xf]
    %v507 = vld [vmem:[%s9 + $0x30] sm:$0xf]
    %v508 = vld [vmem:[%s9 + $0x34] sm:$0xf]
    %v509 = vld [vmem:[%s9 + $0x38] sm:$0xf]
    %v510 = vld [vmem:[%s9 + $0x3c] sm:$0xf]
    %v511 = vld [vmem:[%s10] sm:$0x1]
    %v513 = vlaneseq
    %v514 = vshrl.u32 %v513, 7
    %v515 = vsub.s32 0, %v514
    %v516 = vrot.slane %v511, %v515
    %v534 = vunpack.c.l.b16 %v495
    %v535 = vunpack.c.l.b16 %v496
    %v536 = vunpack.c.l.b16 %v497
    %v537 = vunpack.c.l.b16 %v498
    %v538 = vunpack.c.l.b16 %v499
    %v539 = vunpack.c.l.b16 %v500
    %v540 = vunpack.c.l.b16 %v501
    %v541 = vunpack.c.l.b16 %v502
    %v542 = vunpack.c.l.b16 %v503
    %v543 = vunpack.c.l.b16 %v504
    %v544 = vunpack.c.l.b16 %v505
    %v545 = vunpack.c.l.b16 %v506
    %v546 = vunpack.c.l.b16 %v507
    %v547 = vunpack.c.l.b16 %v508
    %v548 = vunpack.c.l.b16 %v509
    %v549 = vunpack.c.l.b16 %v510
    %v550 = vpack.c.b16 %v535, %v534
    %v551 = vpack.c.b16 %v537, %v536
    %v552 = vpack.c.b16 %v539, %v538
    %v553 = vpack.c.b16 %v541, %v540
    %v554 = vpack.c.b16 %v543, %v542
    %v555 = vpack.c.b16 %v545, %v544
    %v556 = vpack.c.b16 %v547, %v546
    %v557 = vpack.c.b16 %v549, %v548
    %566 = vmatprep.subr.bf16.mxu0 0
    %567 = vmatpush1.bf16.msra.mxu0 %v550
    %568 = vmatprep.subr.bf16.mxu0 0
    %569 = vmatpush1.bf16.msra.mxu0 %v551
    %570 = vmatprep.subr.bf16.mxu0 0
    %571 = vmatpush1.bf16.msra.mxu0 %v552
    %572 = vmatprep.subr.bf16.mxu0 0
    %573 = vmatpush1.bf16.msra.mxu0 %v553
    %574 = vmatprep.subr.bf16.mxu0 0
    %575 = vmatpush1.bf16.msra.mxu0 %v554
    %576 = vmatprep.subr.bf16.mxu0 0
    %577 = vmatpush1.bf16.msra.mxu0 %v555
    %578 = vmatprep.subr.bf16.mxu0 0
    %579 = vmatpush1.bf16.msra.mxu0 %v556
    %580 = vmatprep.subr.bf16.mxu0 0
    %581 = vmatpush1.bf16.msra.mxu0 %v557
    %582 = vmatprep.subr.bf16.mxu0 0
    %583 = vmatpush1.bf16.msra.mxu0 0
    %584 = vmatprep.subr.bf16.mxu0 0
    %585 = vmatpush1.bf16.msra.mxu0 0
    %586 = vmatprep.subr.bf16.mxu0 0
    %587 = vmatpush1.bf16.msra.mxu0 0
    %588 = vmatprep.subr.bf16.mxu0 0
    %589 = vmatpush1.bf16.msra.mxu0 0
    %590 = vmatprep.subr.bf16.mxu0 0
    %591 = vmatpush1.bf16.msra.mxu0 0
    %592 = vmatprep.subr.bf16.mxu0 0
    %593 = vmatpush1.bf16.msra.mxu0 0
    %594 = vmatprep.subr.bf16.mxu0 0
    %595 = vmatpush1.bf16.msra.mxu0 0
    %596 = vmatprep.subr.bf16.mxu0 0
    %597 = vmatpush1.bf16.msra.mxu0 0
    %598 = vmatprep.mubr.bf16.mxu0 0
    %599 = vmatmul.mubr.bf16.gmra.mrb[0].mxu0 %v494
    %v600 = vpop.f32.mrb[0].mxu0
    %v601 = vadd.f32 %v516, %v600
    %v602 = vpop.f32.mrb[0].mxu0
    %v603 = vpop.f32.mrb[0].mxu0
    %v604 = vpop.f32.mrb[0].mxu0
    %605 = vdwg.mxu0
    %606 = vst [vmem:[#allocation2] sm:$0xff] %v601
    %607 = vst [vmem:[#allocation4] sm:$0xff] %v269
    %608 = vst [vmem:[#allocation6] sm:$0xff] %v493
    // Predicated region
    $region46: #{tlrnn_as_sc_forward.1} parent=1 // pred_check
      _
    $region47: #{tlrnn_as_sc_forward.1} parent=1 // pred_check_branch
      %610 = sbr.rel (0) target = $region49
    $region48: #{tlrnn_as_sc_forward.1} parent=1 // pred_region
      %s612 = ssub.s32 128, 128
      %613 = vsyncadd [#allocation3], %s612
      %s615 = sshll.u32 [#allocation2], 4
      %s616 = int_to_ptr.vmem [resolvable:$true] %s615
      %618 = dma.vmem_to_hbm [thread:$0]  %s616, 128, %s11, [#allocation3]
    $region49: #{tlrnn_as_sc_forward.1} parent=1 // pred_fallthru
      _
    // Predicated region
    $region50: #{tlrnn_as_sc_forward.1} parent=1 // pred_check
      _
    $region51: #{tlrnn_as_sc_forward.1} parent=1 // pred_check_branch
      %620 = sbr.rel (0) target = $region53
    $region52: #{tlrnn_as_sc_forward.1} parent=1 // pred_region
      %s622 = ssub.s32 128, 128
      %623 = vsyncadd [#allocation5], %s622
      %s625 = sshll.u32 [#allocation4], 4
      %s626 = int_to_ptr.vmem [resolvable:$true] %s625
      %628 = dma.vmem_to_hbm [thread:$0]  %s626, 128, %s12, [#allocation5]
    $region53: #{tlrnn_as_sc_forward.1} parent=1 // pred_fallthru
      _
    // Predicated region
    $region54: #{tlrnn_as_sc_forward.1} parent=1 // pred_check
      _
    $region55: #{tlrnn_as_sc_forward.1} parent=1 // pred_check_branch
      %630 = sbr.rel (0) target = $region57
    $region56: #{tlrnn_as_sc_forward.1} parent=1 // pred_region
      %s632 = ssub.s32 128, 128
      %633 = vsyncadd [#allocation5], %s632
      %s635 = sshll.u32 [#allocation6], 4
      %s636 = int_to_ptr.vmem [resolvable:$true] %s635
      %638 = dma.vmem_to_hbm [thread:$0]  %s636, 128, %s13, [#allocation5]
    $region57: #{tlrnn_as_sc_forward.1} parent=1 // pred_fallthru
      _
    // Predicated region
    $region58: #{tlrnn_as_sc_forward.1} parent=1 // pred_check
      _
    $region59: #{tlrnn_as_sc_forward.1} parent=1 // pred_check_branch
      %640 = sbr.rel (0) target = $region61
    $region60: #{tlrnn_as_sc_forward.1} parent=1 // pred_region
      %641 = dma.done [#allocation3], 128
    $region61: #{tlrnn_as_sc_forward.1} parent=1 // pred_fallthru
      _
    // Predicated region
    $region62: #{tlrnn_as_sc_forward.1} parent=1 // pred_check
      _
    $region63: #{tlrnn_as_sc_forward.1} parent=1 // pred_check_branch
      %643 = sbr.rel (0) target = $region65
    $region64: #{tlrnn_as_sc_forward.1} parent=1 // pred_region
      %644 = dma.done [#allocation5], 128
    $region65: #{tlrnn_as_sc_forward.1} parent=1 // pred_fallthru
      _
    // Predicated region
    $region66: #{tlrnn_as_sc_forward.1} parent=1 // pred_check
      _
    $region67: #{tlrnn_as_sc_forward.1} parent=1 // pred_check_branch
      %646 = sbr.rel (0) target = $region69
    $region68: #{tlrnn_as_sc_forward.1} parent=1 // pred_region
      %647 = dma.done [#allocation5], 128
    $region69: #{tlrnn_as_sc_forward.1} parent=1 // pred_fallthru
      _
    %648 = vsyncpa [#allocation3], 1
    %649 = vsyncpa [#allocation5], 1

</llo_original>
